<compile_context>
chip_gen: v5e
topology: v5e:2x2
jax: 0.10.0
libtpu: 0.0.40
codegen_flags: <defaults>
</compile_context>

<pallas_src>
import functools

import jax
import jax.numpy as jnp
from jax.experimental import pallas as pl
from jax.experimental.pallas import tpu as pltpu

# ---- problem sizes (small, consistent with the module) -----------------------
B = 2          # batch_size
M = 8          # max_samples
F = 32         # feature_size
C = 16         # cluster_size
O = 32         # output_dim

_BN_EPS = 1e-5     # torch.nn.BatchNorm1d default
_L2_EPS = 1e-12    # torch F.normalize default (clamp_min)


# ---- single fused kernel ------------------------------------------------------
def _netvlad_fused_kernel(x_ref, wc_ref, gamma_ref, beta_ref,
                          cw2t_ref, whc_ref, bh_ref,
                          out_ref, *, b, m, f, c, o):
    n = b * m
    x = x_ref[...]                                                      # (N, F) f32

    # cluster assignment logits: Linear(feature_size -> cluster_size)   (MXU)
    # (bias bc omitted: mathematically removed by training-mode BN's mean.)
    wc = wc_ref[...].astype(jnp.float32)                                # bf16 -> f32
    act = jnp.dot(x, wc, preferred_element_type=jnp.float32)            # (N, C)

    # BatchNorm1d, training-mode biased batch statistics, one pass.
    # Reductions on the (idle) XLU; MXU is kept for the real matmuls.
    inv_n = 1.0 / n
    s1 = jnp.sum(act, axis=0, keepdims=True)                            # (1, C)
    s2 = jnp.sum(act * act, axis=0, keepdims=True)                      # (1, C)
    mean = s1 * inv_n
    var = jnp.maximum(s2 * inv_n - mean * mean, 0.0)                    # clamp: no NaN
    bn_scale = gamma_ref[...] * jax.lax.rsqrt(var + _BN_EPS)            # (1, C) EUP
    bn_shift = beta_ref[...] - mean * bn_scale
    act = act * bn_scale + bn_shift                                     # single FMA pass

    # softmax over clusters (lane axis); denominator reciprocal on the EUP.
    act = act - jnp.max(act, axis=-1, keepdims=True)
    e = jnp.exp(act)
    act = e * pl.reciprocal(jnp.sum(e, axis=-1, keepdims=True), approx=True)

    act_r = act.reshape(b, m, c)                                        # (B, M, C)
    x_r = x.reshape(b, m, f)                                            # (B, M, F)

    # vlad core, directly in (B, C, F) layout:
    #   vlad[b,c,f] = sum_m act[b,m,c]*x[b,m,f] - a_sum[b,c]*cw2[f,c]
    dn = (((1,), (1,)), ((0,), (0,)))            # contract m, batch b (no transposes)
    vlad = jax.lax.dot_general(act_r, x_r, dn,
                               preferred_element_type=jnp.float32)      # (B, C, F)
    a_sum = jnp.sum(act_r, axis=1)                                      # (B, C)  XLU
    vlad = vlad - a_sum[:, :, None] * cw2t_ref[...][None, :, :]

    # intra (over F) + global L2 normalization collapsed into ONE fused scale.
    #   inv1 = 1/max(||vlad[b,c,:]||, eps)  == rsqrt(max(ss1, eps^2))
    #   n2^2 = sum_c ss1*inv1^2   (algebraically the global norm of the
    #   intra-normalized vlad; correct because inv1 uses the SAME eps-clamp).
    ss1 = jnp.sum(vlad * vlad, axis=-1, keepdims=True)                  # (B, C, 1)
    inv1 = jax.lax.rsqrt(jnp.maximum(ss1, _L2_EPS * _L2_EPS))
    ss2 = jnp.sum(ss1 * (inv1 * inv1), axis=1, keepdims=True)           # (B, 1, 1)
    inv2 = jax.lax.rsqrt(jnp.maximum(ss2, _L2_EPS * _L2_EPS))
    vlad = vlad * (inv1 * inv2)                                         # single pass

    # final Linear(C*F -> O) as a C-batched matmul against the repacked
    # (C, F, O) weight (contract F), then fold the C blocks with a reduce.
    #   out[b,o] = sum_c sum_f vlad[b,c,f] * whc[c,f,o] + bh[o]
    whc = whc_ref[...].astype(jnp.float32)                              # bf16 -> f32
    dn2 = (((2,), (1,)), ((1,), (0,)))           # contract F, batch C
    pr = jax.lax.dot_general(vlad, whc, dn2,
                             preferred_element_type=jnp.float32)        # (C, B, O)
    out_ref[...] = jnp.sum(pr, axis=0) + bh_ref[...]                    # (B, O)


# ---- wrapper ------------------------------------------------------------------
@jax.jit
def netvlad_forward(x, params):
    """x: (B, M, F) or (B*M, F). Returns (B, output_dim)."""
    wc, bc, gamma, beta, cw2, wh_t, bh = params
    del bc  # mathematically dead under training-mode BN; not DMA'd to the kernel
    x2 = x.reshape(B * M, F).astype(jnp.float32)

    # host-side (free) weight repacking
    wc_b = wc.astype(jnp.bfloat16)                       # (F, C) MXU operand -> bf16
    cw2t = cw2.T                                         # (C, F) VPU operand -> f32
    # whc[c, f, o] = wh_t[f*C + c, o]  (per-cluster blocks of the flat weight)
    whc = wh_t.reshape(F, C, O).transpose(1, 0, 2).astype(jnp.bfloat16)   # (C, F, O)

    n = B * M
    flops = (2 * n * F * C                # cluster linear
             + 12 * n * C                 # BN + softmax elementwise
             + 2 * B * M * C * F          # vlad contraction
             + 6 * B * C * F              # subtract / norms / scale
             + 2 * B * C * F * O          # final linear (batched over C)
             + B * C * O)                 # fold over C
    transcendentals = n * C + n + B * C + B + C
    operands = (x2, wc_b, gamma, beta, cw2t, whc, bh)
    bytes_accessed = (sum(a.size * a.dtype.itemsize for a in operands)
                      + B * O * 4)
    vmem = pl.BlockSpec(memory_space=pltpu.MemorySpace.VMEM)

    out = pl.pallas_call(
        functools.partial(_netvlad_fused_kernel, b=B, m=M, f=F, c=C, o=O),
        out_shape=jax.ShapeDtypeStruct((B, O), jnp.float32),
        in_specs=[vmem] * len(operands),
        out_specs=vmem,
        cost_estimate=pl.CostEstimate(flops=flops,
                                      transcendentals=transcendentals,
                                      bytes_accessed=bytes_accessed),
    )(*operands)
    return out


# ---- pure-JAX reference (for verification) ------------------------------------
def netvlad_ref(x, params):
    wc, bc, gamma, beta, cw2, wh_t, bh = params
    x2 = x.reshape(B * M, F)
    act = x2 @ wc + bc
    mean = act.mean(0, keepdims=True)
    var = ((act - mean) ** 2).mean(0, keepdims=True)
    act = (act - mean) / jnp.sqrt(var + _BN_EPS) * gamma + beta
    act = jax.nn.softmax(act, axis=-1)
    act_r = act.reshape(B, M, C)
    a_sum = act_r.sum(1, keepdims=True)
    a = a_sum * cw2[None]
    vlad = jnp.einsum('bmf,bmc->bfc', x2.reshape(B, M, F), act_r)
    vlad = vlad - a
    vlad = vlad / jnp.maximum(
        jnp.sqrt(jnp.sum(vlad * vlad, axis=1, keepdims=True)), _L2_EPS)
    vf = vlad.reshape(B, F * C)
    vf = vf / jnp.maximum(
        jnp.sqrt(jnp.sum(vf * vf, axis=1, keepdims=True)), _L2_EPS)
    return vf @ wh_t + bh


# ---- deterministic parameter construction --------------------------------------
def make_params(key):
    ks = jax.random.split(key, 6)
    # cluster_weights: Linear(F -> C) -> transposed weight (F, C) and bias (1, C).
    # MXU weights are made bf16-representable (round-trip) so the bf16 kernel
    # storage is lossless w.r.t. the f32 reference.
    wc = (jax.random.normal(ks[0], (F, C), jnp.float32) * (1.0 / jnp.sqrt(F)))
    wc = wc.astype(jnp.bfloat16).astype(jnp.float32)
    bc = jax.random.normal(ks[1], (1, C), jnp.float32) * 0.1
    # bn2: BatchNorm1d(C) affine params (PyTorch default init: gamma=1, beta=0)
    gamma = jnp.ones((1, C), jnp.float32)
    beta = jnp.zeros((1, C), jnp.float32)
    # cluster_weights2: Parameter randn(1, F, C) -> stored as (F, C), stays f32
    cw2 = jax.random.normal(ks[2], (F, C), jnp.float32)
    # hidden1_weights: Linear(C*F -> O) -> transposed weight (F*C, O) and bias (1, O)
    wh_t = (jax.random.normal(ks[3], (C * F, O), jnp.float32)
            * (1.0 / jnp.sqrt(C * F)))
    wh_t = wh_t.astype(jnp.bfloat16).astype(jnp.float32)
    bh = jax.random.normal(ks[4], (1, O), jnp.float32) * 0.1
    return (wc, bc, gamma, beta, cw2, wh_t, bh)


if __name__ == "__main__":
    key = jax.random.PRNGKey(0)
    k_x, k_p = jax.random.split(key)
    x = jax.random.normal(k_x, (B, M, F), jnp.float32)
    params = make_params(k_p)

    out = jax.block_until_ready(netvlad_forward(x, params))
    ref = jax.block_until_ready(netvlad_ref(x, params))

    assert out.shape == (B, O), out.shape
    assert jnp.allclose(out, ref, rtol=1e-4, atol=1e-4), (
        float(jnp.max(jnp.abs(out - ref))))
    print("KERNEL_OK")
</pallas_src>

<mosaic_0001>
module attributes {stable_mosaic.version = 11 : i64} {
  func.func @_netvlad_fused_kernel(%arg0: memref<16x32xf32, #tpu.memory_space<vmem>>, %arg1: memref<32x16xbf16, #tpu.memory_space<vmem>>, %arg2: memref<1x16xf32, #tpu.memory_space<vmem>>, %arg3: memref<1x16xf32, #tpu.memory_space<vmem>>, %arg4: memref<16x32xf32, #tpu.memory_space<vmem>>, %arg5: memref<16x32x32xbf16, #tpu.memory_space<vmem>>, %arg6: memref<1x32xf32, #tpu.memory_space<vmem>>, %arg7: memref<2x32xf32, #tpu.memory_space<vmem>>) attributes {dimension_semantics = [], scalar_prefetch = 0 : i64, scratch_operands = 0 : i64, tpu.core_type = #tpu.core_type<tc>} {
    %c0 = arith.constant 0 : index
    %c0_0 = arith.constant 0 : index
    %0 = vector.load %arg0[%c0, %c0_0] : memref<16x32xf32, #tpu.memory_space<vmem>>, vector<16x32xf32>
    %c0_1 = arith.constant 0 : index
    %c0_2 = arith.constant 0 : index
    %1 = vector.load %arg1[%c0_1, %c0_2] : memref<32x16xbf16, #tpu.memory_space<vmem>>, vector<32x16xbf16>
    %2 = arith.extf %1 : vector<32x16xbf16> to vector<32x16xf32>
    %cst = arith.constant dense<0.000000e+00> : vector<16x16xf32>
    %3 = tpu.matmul %0, %2, %cst {dimension_numbers = #tpu.dot_dimension_numbers<[1], [0], [0], [1], [0, 0, 1, 1], [], []>} : vector<16x32xf32>, vector<32x16xf32>, vector<16x16xf32> -> vector<16x16xf32>
    %cst_3 = arith.constant dense<0.000000e+00> : vector<16xf32>
    %4 = vector.multi_reduction <add>, %3, %cst_3 [0] : vector<16x16xf32> to vector<16xf32>
    %5 = vector.shape_cast %4 : vector<16xf32> to vector<1x16xf32>
    %6 = arith.mulf %3, %3 : vector<16x16xf32>
    %cst_4 = arith.constant dense<0.000000e+00> : vector<16xf32>
    %7 = vector.multi_reduction <add>, %6, %cst_4 [0] : vector<16x16xf32> to vector<16xf32>
    %8 = vector.shape_cast %7 : vector<16xf32> to vector<1x16xf32>
    %cst_5 = arith.constant 6.250000e-02 : f32
    %9 = vector.broadcast %cst_5 : f32 to vector<1x16xf32>
    %10 = arith.mulf %5, %9 : vector<1x16xf32>
    %cst_6 = arith.constant 6.250000e-02 : f32
    %11 = vector.broadcast %cst_6 : f32 to vector<1x16xf32>
    %12 = arith.mulf %8, %11 : vector<1x16xf32>
    %13 = arith.mulf %10, %10 : vector<1x16xf32>
    %14 = arith.subf %12, %13 : vector<1x16xf32>
    %cst_7 = arith.constant 0.000000e+00 : f32
    %15 = vector.broadcast %cst_7 : f32 to vector<1x16xf32>
    %16 = arith.maximumf %14, %15 : vector<1x16xf32>
    %c0_8 = arith.constant 0 : index
    %c0_9 = arith.constant 0 : index
    %17 = vector.load %arg2[%c0_8, %c0_9] : memref<1x16xf32, #tpu.memory_space<vmem>>, vector<1x16xf32>
    %cst_10 = arith.constant 9.99999974E-6 : f32
    %18 = vector.broadcast %cst_10 : f32 to vector<1x16xf32>
    %19 = arith.addf %16, %18 : vector<1x16xf32>
    %20 = math.rsqrt %19 : vector<1x16xf32>
    %21 = arith.mulf %17, %20 : vector<1x16xf32>
    %c0_11 = arith.constant 0 : index
    %c0_12 = arith.constant 0 : index
    %22 = vector.load %arg3[%c0_11, %c0_12] : memref<1x16xf32, #tpu.memory_space<vmem>>, vector<1x16xf32>
    %23 = arith.mulf %10, %21 : vector<1x16xf32>
    %24 = arith.subf %22, %23 : vector<1x16xf32>
    %25 = vector.broadcast %21 : vector<1x16xf32> to vector<16x16xf32>
    %26 = arith.mulf %3, %25 : vector<16x16xf32>
    %27 = vector.broadcast %24 : vector<1x16xf32> to vector<16x16xf32>
    %28 = arith.addf %26, %27 : vector<16x16xf32>
    %cst_13 = arith.constant dense<0xFF800000> : vector<16xf32>
    %29 = vector.multi_reduction <maximumf>, %28, %cst_13 [1] : vector<16x16xf32> to vector<16xf32>
    %30 = vector.shape_cast %29 : vector<16xf32> to vector<16x1xf32>
    %31 = vector.broadcast %30 : vector<16x1xf32> to vector<16x16xf32>
    %32 = arith.subf %28, %31 : vector<16x16xf32>
    %33 = math.exp %32 : vector<16x16xf32>
    %cst_14 = arith.constant dense<0.000000e+00> : vector<16xf32>
    %34 = vector.multi_reduction <add>, %33, %cst_14 [1] : vector<16x16xf32> to vector<16xf32>
    %35 = vector.shape_cast %34 : vector<16xf32> to vector<16x1xf32>
    %36 = tpu.reciprocal %35 {approx = true} : vector<16x1xf32> -> vector<16x1xf32>
    %37 = vector.broadcast %36 : vector<16x1xf32> to vector<16x16xf32>
    %38 = arith.mulf %33, %37 : vector<16x16xf32>
    %39 = vector.shape_cast %38 : vector<16x16xf32> to vector<2x8x16xf32>
    %40 = vector.shape_cast %0 : vector<16x32xf32> to vector<2x8x32xf32>
    %cst_15 = arith.constant dense<0.000000e+00> : vector<2x16x32xf32>
    %41 = tpu.matmul %39, %40, %cst_15 {dimension_numbers = #tpu.dot_dimension_numbers<[1], [1], [2], [2], [0, 0, 0, 2, 1, 2], [0], [0]>} : vector<2x8x16xf32>, vector<2x8x32xf32>, vector<2x16x32xf32> -> vector<2x16x32xf32>
    %cst_16 = arith.constant dense<0.000000e+00> : vector<2x16xf32>
    %42 = vector.multi_reduction <add>, %39, %cst_16 [1] : vector<2x8x16xf32> to vector<2x16xf32>
    %43 = vector.shape_cast %42 : vector<2x16xf32> to vector<2x16x1xf32>
    %c0_17 = arith.constant 0 : index
    %c0_18 = arith.constant 0 : index
    %44 = vector.load %arg4[%c0_17, %c0_18] : memref<16x32xf32, #tpu.memory_space<vmem>>, vector<16x32xf32>
    %45 = vector.shape_cast %44 : vector<16x32xf32> to vector<1x16x32xf32>
    %46 = vector.broadcast %43 : vector<2x16x1xf32> to vector<2x16x32xf32>
    %47 = vector.broadcast %45 : vector<1x16x32xf32> to vector<2x16x32xf32>
    %48 = arith.mulf %46, %47 : vector<2x16x32xf32>
    %49 = arith.subf %41, %48 : vector<2x16x32xf32>
    %50 = arith.mulf %49, %49 : vector<2x16x32xf32>
    %cst_19 = arith.constant dense<0.000000e+00> : vector<2x16xf32>
    %51 = vector.multi_reduction <add>, %50, %cst_19 [2] : vector<2x16x32xf32> to vector<2x16xf32>
    %52 = vector.shape_cast %51 : vector<2x16xf32> to vector<2x16x1xf32>
    %cst_20 = arith.constant 1.000000e-24 : f32
    %53 = vector.broadcast %cst_20 : f32 to vector<2x16x1xf32>
    %54 = arith.maximumf %52, %53 : vector<2x16x1xf32>
    %55 = math.rsqrt %54 : vector<2x16x1xf32>
    %56 = arith.mulf %55, %55 : vector<2x16x1xf32>
    %57 = arith.mulf %52, %56 : vector<2x16x1xf32>
    %cst_21 = arith.constant dense<0.000000e+00> : vector<2x1xf32>
    %58 = vector.multi_reduction <add>, %57, %cst_21 [1] : vector<2x16x1xf32> to vector<2x1xf32>
    %59 = vector.shape_cast %58 : vector<2x1xf32> to vector<2x1x1xf32>
    %cst_22 = arith.constant 1.000000e-24 : f32
    %60 = vector.broadcast %cst_22 : f32 to vector<2x1x1xf32>
    %61 = arith.maximumf %59, %60 : vector<2x1x1xf32>
    %62 = math.rsqrt %61 : vector<2x1x1xf32>
    %63 = vector.broadcast %62 : vector<2x1x1xf32> to vector<2x16x1xf32>
    %64 = arith.mulf %55, %63 : vector<2x16x1xf32>
    %65 = vector.broadcast %64 : vector<2x16x1xf32> to vector<2x16x32xf32>
    %66 = arith.mulf %49, %65 : vector<2x16x32xf32>
    %c0_23 = arith.constant 0 : index
    %c0_24 = arith.constant 0 : index
    %c0_25 = arith.constant 0 : index
    %67 = vector.load %arg5[%c0_23, %c0_24, %c0_25] : memref<16x32x32xbf16, #tpu.memory_space<vmem>>, vector<16x32x32xbf16>
    %68 = arith.extf %67 : vector<16x32x32xbf16> to vector<16x32x32xf32>
    %cst_26 = arith.constant dense<0.000000e+00> : vector<16x2x32xf32>
    %69 = tpu.matmul %66, %68, %cst_26 {dimension_numbers = #tpu.dot_dimension_numbers<[2], [1], [0], [2], [0, 1, 0, 0, 1, 2], [1], [0]>} : vector<2x16x32xf32>, vector<16x32x32xf32>, vector<16x2x32xf32> -> vector<16x2x32xf32>
    %cst_27 = arith.constant dense<0.000000e+00> : vector<2x32xf32>
    %70 = vector.multi_reduction <add>, %69, %cst_27 [0] : vector<16x2x32xf32> to vector<2x32xf32>
    %c0_28 = arith.constant 0 : index
    %c0_29 = arith.constant 0 : index
    %71 = vector.load %arg6[%c0_28, %c0_29] : memref<1x32xf32, #tpu.memory_space<vmem>>, vector<1x32xf32>
    %72 = vector.broadcast %71 : vector<1x32xf32> to vector<2x32xf32>
    %73 = arith.addf %70, %72 : vector<2x32xf32>
    %c0_30 = arith.constant 0 : index
    %c0_31 = arith.constant 0 : index
    %74 = vector.load %arg7[%c0_30, %c0_31] : memref<2x32xf32, #tpu.memory_space<vmem>>, vector<2x32xf32>
    tpu.vector_store %arg7[%c0_30, %c0_31], %73 {strides = array<i32>} : memref<2x32xf32, #tpu.memory_space<vmem>>, vector<2x32xf32>,
    return
  }
}

</mosaic_0001>

<llo_original>
// kernel: netvlad_forward.1
$region0: #{netvlad_forward.1}
  #allocation0 [shape = 'u32[]', space=smem, size = 0x4, offset = 0x4, fixed_abs, tag = 'smem constant byte address 0x4 - core index']
  #allocation1 [shape = 'u32[72,128]{1,0:T(1,128)}', space=vmem, size = 0x9000, scoped, tag = 'internal scratch']
  %s0 = inlined_call_operand.vmem [shape: f32[16,32], index: 0, kind: input, shape index: {}]
  %s1 = inlined_call_operand.vmem [shape: bf16[32,16], index: 1, kind: input, shape index: {}]
  %s2 = inlined_call_operand.vmem [shape: f32[1,16], index: 2, kind: input, shape index: {}]
  %s3 = inlined_call_operand.vmem [shape: f32[1,16], index: 3, kind: input, shape index: {}]
  %s4 = inlined_call_operand.vmem [shape: f32[16,32], index: 4, kind: input, shape index: {}]
  %s5 = inlined_call_operand.vmem [shape: bf16[16,32,32], index: 5, kind: input, shape index: {}]
  %s6 = inlined_call_operand.vmem [shape: f32[1,32], index: 6, kind: input, shape index: {}]
  %s7 = inlined_call_operand.hbm [shape: f32[2,32], index: 7, kind: output, shape index: {}]
  %s8 = sld [smem:[#allocation0]]
  $region38: #{netvlad_forward.1} parent=0
    _
  %s10 = ssub.s32 1, %s8
  %s11 = scalar_select 0, %s10, %s8
  $region1: #{netvlad_forward.1} parent=0
    #allocation2 [shape = 'u8[1024]{0}', space=vmem, size = 0x400, scoped, tag = 'output window, operand 0, single buffered']
    #allocation3 [shape = 's32[1]{0}', space=sflag, size = 0x4, scoped, tag = 'scoped memory for netvlad_forward.1']
    %12 = vsyncpa [#allocation3], 0
    // Predicated region
    $region2: #{netvlad_forward.1} parent=1 // pred_check
      _
    $region3: #{netvlad_forward.1} parent=1 // pred_check_branch
      %14 = sbr.rel (0) target = $region5
    $region4: #{netvlad_forward.1} parent=1 // pred_region
      _
    $region5: #{netvlad_forward.1} parent=1 // pred_fallthru
      _
    // Predicated region
    $region6: #{netvlad_forward.1} parent=1 // pred_check
      _
    $region7: #{netvlad_forward.1} parent=1 // pred_check_branch
      %16 = sbr.rel (0) target = $region9
    $region8: #{netvlad_forward.1} parent=1 // pred_region
      _
    $region9: #{netvlad_forward.1} parent=1 // pred_fallthru
      _
    // Predicated region
    $region10: #{netvlad_forward.1} parent=1 // pred_check
      _
    $region11: #{netvlad_forward.1} parent=1 // pred_check_branch
      %18 = sbr.rel (0) target = $region13
    $region12: #{netvlad_forward.1} parent=1 // pred_region
      _
    $region13: #{netvlad_forward.1} parent=1 // pred_fallthru
      _
    // Predicated region
    $region14: #{netvlad_forward.1} parent=1 // pred_check
      _
    $region15: #{netvlad_forward.1} parent=1 // pred_check_branch
      %20 = sbr.rel (0) target = $region17
    $region16: #{netvlad_forward.1} parent=1 // pred_region
      _
    $region17: #{netvlad_forward.1} parent=1 // pred_fallthru
      _
    // Predicated region
    $region18: #{netvlad_forward.1} parent=1 // pred_check
      _
    $region19: #{netvlad_forward.1} parent=1 // pred_check_branch
      %22 = sbr.rel (0) target = $region21
    $region20: #{netvlad_forward.1} parent=1 // pred_region
      _
    $region21: #{netvlad_forward.1} parent=1 // pred_fallthru
      _
    // Predicated region
    $region22: #{netvlad_forward.1} parent=1 // pred_check
      _
    $region23: #{netvlad_forward.1} parent=1 // pred_check_branch
      %24 = sbr.rel (0) target = $region25
    $region24: #{netvlad_forward.1} parent=1 // pred_region
      _
    $region25: #{netvlad_forward.1} parent=1 // pred_fallthru
      _
    // Predicated region
    $region26: #{netvlad_forward.1} parent=1 // pred_check
      _
    $region27: #{netvlad_forward.1} parent=1 // pred_check_branch
      %26 = sbr.rel (0) target = $region29
    $region28: #{netvlad_forward.1} parent=1 // pred_region
      _
    $region29: #{netvlad_forward.1} parent=1 // pred_fallthru
      _
    %v27 = vld [vmem:[%s0] sm:$0xff]
    %v28 = vld [vmem:[%s0 + $0x8] sm:$0xff]
    %v29 = vld [vmem:[%s1] sm:$0xf]
    %v30 = vld [vmem:[%s1 + $0x4] sm:$0xf]
    %v31 = vld [vmem:[%s1 + $0x8] sm:$0xf]
    %v32 = vld [vmem:[%s1 + $0xc] sm:$0xf]
    %v33 = vunpack.c.l.bf16 %v29
    %v34 = vunpack.c.l.bf16 %v30
    %v35 = vunpack.c.l.bf16 %v31
    %v36 = vunpack.c.l.bf16 %v32
    %vm37 = vcmask 261120
    %v39 = vsel %vm37, %v27, 0
    %v42 = vsel %vm37, %v28, 0
    %44 = vmatpush.msra.mxu0 0.0
    %45 = vmatpush.msra.mxu0 0.0
    %46 = vmatpush.msra.mxu0 0.0
    %47 = vmatpush.msra.mxu0 0.0
    %48 = vmatpush.msra.mxu0 0.0
    %49 = vmatpush.msra.mxu0 0.0
    %50 = vmatpush.msra.mxu0 0.0
    %51 = vmatpush.msra.mxu0 0.0
    %52 = vmatpush.msra.mxu0 0.0
    %53 = vmatpush.msra.mxu0 0.0
    %54 = vmatpush.msra.mxu0 0.0
    %55 = vmatpush.msra.mxu0 0.0
    %56 = vmatpush.msra.mxu0 %v36
    %57 = vmatpush.msra.mxu0 %v35
    %58 = vmatpush.msra.mxu0 %v34
    %59 = vmatpush.msra.mxu0 %v33
    %60 = vmatmul.f32.gmra.mxu0 %v39
    %v61 = vpop.f32.mrf.mxu0
    %v62 = vadd.f32 0.0, %v61
    %63 = vmatmul.f32.gmra.mxu0 %v42
    %v64 = vpop.f32.mrf.mxu0
    %v65 = vadd.f32 0.0, %v64
    %66 = vdwg.mxu0
    %vm67 = vcmask 130048
    %v68 = vsel %vm67, %v62, 0.0
    %v69 = vsel %vm67, %v65, 0.0
    %v70 = vadd.f32 %v68, %v69
    %v71 = vrot.slane %v70, 4
    %v72 = vadd.f32 %v70, %v71
    %v73 = vrot.slane %v72, 2
    %v74 = vadd.f32 %v72, %v73
    %v75 = vrot.slane %v74, 1
    %v76 = vadd.f32 %v74, %v75
    %v77 = vmul.f32 %v62, %v62
    %v78 = vmul.f32 %v65, %v65
    %v79 = vsel %vm67, %v77, 0.0
    %v80 = vsel %vm67, %v78, 0.0
    %v81 = vadd.f32 %v79, %v80
    %v82 = vrot.slane %v81, 4
    %v83 = vadd.f32 %v81, %v82
    %v84 = vrot.slane %v83, 2
    %v85 = vadd.f32 %v83, %v84
    %v86 = vrot.slane %v85, 1
    %v87 = vadd.f32 %v85, %v86
    %v88 = vmul.f32 %v76, 0.0625
    %v89 = vmul.f32 %v87, 0.0625
    %v90 = vmul.f32 %v88, %v88
    %v91 = vsub.f32 %v89, %v90
    %v92 = vmax.f32 %v91, 0.0
    %v93 = vld [vmem:[%s2] sm:$0x1]
    %v94 = vadd.f32 %v92, 1e-05
    %v95 = vrsqrt.pop %v94
    %v96 = vmul.f32 %v95, %v94
    %v97 = vmul.f32 %v96, %v95
    %v98 = vmul.f32 0.5, %v97
    %v99 = vsub.f32 1.5, %v98
    %v100 = vmul.f32 %v95, %v99
    %vm101 = vweird.f32 %v94
    %vm102 = vweird.f32 %v95
    %vm103 = vmor %vm101, %vm102
    %v104 = vsel %vm103, %v95, %v100
    %v105 = vmul.f32 %v93, %v104
    %v106 = vld [vmem:[%s3] sm:$0x1]
    %v107 = vmul.f32 %v88, %v105
    %v108 = vsub.f32 %v106, %v107
    %v110 = vperm.slane %v105, 0
    %v112 = vmul.f32 %v62, %v110
    %v113 = vmul.f32 %v65, %v110
    %v115 = vperm.slane %v108, 0
    %v117 = vadd.f32 %v112, %v115
    %v118 = vadd.f32 %v113, %v115
    %v119 = vsel %vm67, %v117, -inf
    %120 = vmax.xlane.f32.xlu0 %v119
    %v121 = vpop.xlane.xlu0 %120
    %v122 = vsel %vm67, %v118, -inf
    %123 = vmax.xlane.f32.xlu0 %v122
    %v124 = vpop.xlane.xlu0 %123
    %v125 = vsub.f32 %v117, %v121
    %v126 = vsub.f32 %v118, %v124
    %v127 = vmul.f32 %v125, 1.442695
    %v128 = vpow.pop %v127
    %v129 = vmul.f32 %v126, 1.442695
    %v130 = vpow.pop %v129
    %v131 = vsel %vm67, %v128, 0.0
    %132 = vadd.xlane.f32.xlu0 %v131
    %v133 = vpop.xlane.xlu0 %132
    %v134 = vsel %vm67, %v130, 0.0
    %135 = vadd.xlane.f32.xlu0 %v134
    %v136 = vpop.xlane.xlu0 %135
    %v137 = vrcp.pop %v133
    %v138 = vrcp.pop %v136
    %v139 = vmul.f32 %v128, %v137
    %v140 = vmul.f32 %v130, %v138
    %141 = vxpose.xlu0.b32.start [1/16] %v139, 128
    %142 = vxpose.xlu0.b32.cont [2/16] 0.0, 128
    %143 = vxpose.xlu0.b32.cont [3/16] 0.0, 128
    %144 = vxpose.xlu0.b32.cont [4/16] 0.0, 128
    %145 = vxpose.xlu0.b32.cont [5/16] 0.0, 128
    %146 = vxpose.xlu0.b32.cont [6/16] 0.0, 128
    %147 = vxpose.xlu0.b32.cont [7/16] 0.0, 128
    %148 = vxpose.xlu0.b32.cont [8/16] 0.0, 128
    %149 = vxpose.xlu0.b32.cont [9/16] 0.0, 128
    %150 = vxpose.xlu0.b32.cont [10/16] 0.0, 128
    %151 = vxpose.xlu0.b32.cont [11/16] 0.0, 128
    %152 = vxpose.xlu0.b32.cont [12/16] 0.0, 128
    %153 = vxpose.xlu0.b32.cont [13/16] 0.0, 128
    %154 = vxpose.xlu0.b32.cont [14/16] 0.0, 128
    %155 = vxpose.xlu0.b32.cont [15/16] 0.0, 128
    %156 = vxpose.xlu0.b32.end [16/16] 0.0, 128
    %v157 = vpop.trf.xlu0
    %v158 = vpop.trf.xlu0
    %v159 = vpop.trf.xlu0
    %v160 = vpop.trf.xlu0
    %v161 = vpop.trf.xlu0
    %v162 = vpop.trf.xlu0
    %v163 = vpop.trf.xlu0
    %v164 = vpop.trf.xlu0
    %v165 = vpop.trf.xlu0
    %v166 = vpop.trf.xlu0
    %v167 = vpop.trf.xlu0
    %v168 = vpop.trf.xlu0
    %v169 = vpop.trf.xlu0
    %v170 = vpop.trf.xlu0
    %v171 = vpop.trf.xlu0
    %v172 = vpop.trf.xlu0
    %vm173 = vcmask 64512
    %v175 = vsel %vm173, %v157, 0
    %v178 = vsel %vm173, %v158, 0
    %180 = vmatpush.msra.mxu0 0.0
    %181 = vmatpush.msra.mxu0 0.0
    %182 = vmatpush.msra.mxu0 0.0
    %183 = vmatpush.msra.mxu0 0.0
    %184 = vmatpush.msra.mxu0 0.0
    %185 = vmatpush.msra.mxu0 0.0
    %186 = vmatpush.msra.mxu0 0.0
    %187 = vmatpush.msra.mxu0 0.0
    %188 = vmatpush.msra.mxu0 0.0
    %189 = vmatpush.msra.mxu0 0.0
    %190 = vmatpush.msra.mxu0 0.0
    %191 = vmatpush.msra.mxu0 0.0
    %192 = vmatpush.msra.mxu0 0.0
    %193 = vmatpush.msra.mxu0 0.0
    %194 = vmatpush.msra.mxu0 0.0
    %195 = vmatpush.msra.mxu0 %v27
    %196 = vmatmul.f32.gmra.mxu0 %v175
    %v197 = vpop.f32.mrf.mxu0
    %v198 = vadd.f32 0.0, %v197
    %199 = vmatmul.f32.gmra.mxu0 %v178
    %v200 = vpop.f32.mrf.mxu0
    %v201 = vadd.f32 0.0, %v200
    %202 = vdwg.mxu0
    %203 = vxpose.xlu0.b32.start [1/16] %v140, 128
    %204 = vxpose.xlu0.b32.cont [2/16] 0.0, 128
    %205 = vxpose.xlu0.b32.cont [3/16] 0.0, 128
    %206 = vxpose.xlu0.b32.cont [4/16] 0.0, 128
    %207 = vxpose.xlu0.b32.cont [5/16] 0.0, 128
    %208 = vxpose.xlu0.b32.cont [6/16] 0.0, 128
    %209 = vxpose.xlu0.b32.cont [7/16] 0.0, 128
    %210 = vxpose.xlu0.b32.cont [8/16] 0.0, 128
    %211 = vxpose.xlu0.b32.cont [9/16] 0.0, 128
    %212 = vxpose.xlu0.b32.cont [10/16] 0.0, 128
    %213 = vxpose.xlu0.b32.cont [11/16] 0.0, 128
    %214 = vxpose.xlu0.b32.cont [12/16] 0.0, 128
    %215 = vxpose.xlu0.b32.cont [13/16] 0.0, 128
    %216 = vxpose.xlu0.b32.cont [14/16] 0.0, 128
    %217 = vxpose.xlu0.b32.cont [15/16] 0.0, 128
    %218 = vxpose.xlu0.b32.end [16/16] 0.0, 128
    %v219 = vpop.trf.xlu0
    %v220 = vpop.trf.xlu0
    %v221 = vpop.trf.xlu0
    %v222 = vpop.trf.xlu0
    %v223 = vpop.trf.xlu0
    %v224 = vpop.trf.xlu0
    %v225 = vpop.trf.xlu0
    %v226 = vpop.trf.xlu0
    %v227 = vpop.trf.xlu0
    %v228 = vpop.trf.xlu0
    %v229 = vpop.trf.xlu0
    %v230 = vpop.trf.xlu0
    %v231 = vpop.trf.xlu0
    %v232 = vpop.trf.xlu0
    %v233 = vpop.trf.xlu0
    %v234 = vpop.trf.xlu0
    %v236 = vsel %vm173, %v219, 0
    %v239 = vsel %vm173, %v220, 0
    %241 = vmatpush.msra.mxu0 0.0
    %242 = vmatpush.msra.mxu0 0.0
    %243 = vmatpush.msra.mxu0 0.0
    %244 = vmatpush.msra.mxu0 0.0
    %245 = vmatpush.msra.mxu0 0.0
    %246 = vmatpush.msra.mxu0 0.0
    %247 = vmatpush.msra.mxu0 0.0
    %248 = vmatpush.msra.mxu0 0.0
    %249 = vmatpush.msra.mxu0 0.0
    %250 = vmatpush.msra.mxu0 0.0
    %251 = vmatpush.msra.mxu0 0.0
    %252 = vmatpush.msra.mxu0 0.0
    %253 = vmatpush.msra.mxu0 0.0
    %254 = vmatpush.msra.mxu0 0.0
    %255 = vmatpush.msra.mxu0 0.0
    %256 = vmatpush.msra.mxu0 %v28
    %257 = vmatmul.f32.gmra.mxu0 %v236
    %v258 = vpop.f32.mrf.mxu0
    %v259 = vadd.f32 0.0, %v258
    %260 = vmatmul.f32.gmra.mxu0 %v239
    %v261 = vpop.f32.mrf.mxu0
    %v262 = vadd.f32 0.0, %v261
    %263 = vdwg.mxu0
    %v264 = vsel %vm67, %v139, 0.0
    %v265 = vrot.slane %v264, 4
    %v266 = vadd.f32 %v264, %v265
    %v267 = vrot.slane %v266, 2
    %v268 = vadd.f32 %v266, %v267
    %v269 = vrot.slane %v268, 1
    %v270 = vadd.f32 %v268, %v269
    %v271 = vsel %vm67, %v140, 0.0
    %v272 = vrot.slane %v271, 4
    %v273 = vadd.f32 %v271, %v272
    %v274 = vrot.slane %v273, 2
    %v275 = vadd.f32 %v273, %v274
    %v276 = vrot.slane %v275, 1
    %v277 = vadd.f32 %v275, %v276
    %v278 = vlaneseq
    %v279 = vshrl.u32 %v278, 7
    %281 = vset.pattern.permute.xlu0 %v279
    %282 = vperm.xlu0 %281, %v270
    %v283 = vpop.permute.xlu0 %282
    %v284 = vlaneseq
    %v285 = vshrl.u32 %v284, 7
    %v286 = vadd.s32 %v285, 8
    %287 = vset.pattern.permute.xlu0 %v286
    %288 = vperm.xlu0 %287, %v270
    %v289 = vpop.permute.xlu0 %288
    %v290 = vlaneseq
    %v291 = vshrl.u32 %v290, 7
    %293 = vset.pattern.permute.xlu0 %v291
    %294 = vperm.xlu0 %293, %v277
    %v295 = vpop.permute.xlu0 %294
    %v296 = vlaneseq
    %v297 = vshrl.u32 %v296, 7
    %v298 = vadd.s32 %v297, 8
    %299 = vset.pattern.permute.xlu0 %v298
    %300 = vperm.xlu0 %299, %v277
    %v301 = vpop.permute.xlu0 %300
    %v302 = vld [vmem:[%s4] sm:$0xff]
    %v303 = vld [vmem:[%s4 + $0x8] sm:$0xff]
    %v304 = vmul.f32 %v283, %v302
    %v305 = vmul.f32 %v289, %v303
    %v306 = vmul.f32 %v295, %v302
    %v307 = vmul.f32 %v301, %v303
    %v308 = vsub.f32 %v198, %v304
    %v309 = vsub.f32 %v201, %v305
    %v310 = vsub.f32 %v259, %v306
    %v311 = vsub.f32 %v262, %v307
    %v312 = vmul.f32 %v308, %v308
    %v313 = vmul.f32 %v309, %v309
    %v314 = vmul.f32 %v310, %v310
    %v315 = vmul.f32 %v311, %v311
    %v316 = vsel %vm37, %v312, 0.0
    %317 = vadd.xlane.f32.xlu0 %v316
    %v318 = vpop.xlane.xlu0 %317
    %v319 = vsel %vm37, %v313, 0.0
    %320 = vadd.xlane.f32.xlu0 %v319
    %v321 = vpop.xlane.xlu0 %320
    %v322 = vsel %vm37, %v314, 0.0
    %323 = vadd.xlane.f32.xlu0 %v322
    %v324 = vpop.xlane.xlu0 %323
    %v325 = vsel %vm37, %v315, 0.0
    %326 = vadd.xlane.f32.xlu0 %v325
    %v327 = vpop.xlane.xlu0 %326
    %v328 = vmax.f32 %v318, 1e-24
    %v329 = vmax.f32 %v321, 1e-24
    %v330 = vmax.f32 %v324, 1e-24
    %v331 = vmax.f32 %v327, 1e-24
    %v332 = vrsqrt.pop %v328
    %v333 = vmul.f32 %v332, %v328
    %v334 = vmul.f32 %v333, %v332
    %v335 = vmul.f32 0.5, %v334
    %v336 = vsub.f32 1.5, %v335
    %v337 = vmul.f32 %v332, %v336
    %vm338 = vweird.f32 %v328
    %vm339 = vweird.f32 %v332
    %vm340 = vmor %vm338, %vm339
    %v341 = vsel %vm340, %v332, %v337
    %v342 = vrsqrt.pop %v329
    %v343 = vmul.f32 %v342, %v329
    %v344 = vmul.f32 %v343, %v342
    %v345 = vmul.f32 0.5, %v344
    %v346 = vsub.f32 1.5, %v345
    %v347 = vmul.f32 %v342, %v346
    %vm348 = vweird.f32 %v329
    %vm349 = vweird.f32 %v342
    %vm350 = vmor %vm348, %vm349
    %v351 = vsel %vm350, %v342, %v347
    %v352 = vrsqrt.pop %v330
    %v353 = vmul.f32 %v352, %v330
    %v354 = vmul.f32 %v353, %v352
    %v355 = vmul.f32 0.5, %v354
    %v356 = vsub.f32 1.5, %v355
    %v357 = vmul.f32 %v352, %v356
    %vm358 = vweird.f32 %v330
    %vm359 = vweird.f32 %v352
    %vm360 = vmor %vm358, %vm359
    %v361 = vsel %vm360, %v352, %v357
    %v362 = vrsqrt.pop %v331
    %v363 = vmul.f32 %v362, %v331
    %v364 = vmul.f32 %v363, %v362
    %v365 = vmul.f32 0.5, %v364
    %v366 = vsub.f32 1.5, %v365
    %v367 = vmul.f32 %v362, %v366
    %vm368 = vweird.f32 %v331
    %vm369 = vweird.f32 %v362
    %vm370 = vmor %vm368, %vm369
    %v371 = vsel %vm370, %v362, %v367
    %v372 = vmul.f32 %v341, %v341
    %v373 = vmul.f32 %v351, %v351
    %v374 = vmul.f32 %v361, %v361
    %v375 = vmul.f32 %v371, %v371
    %v376 = vmul.f32 %v318, %v372
    %v377 = vmul.f32 %v321, %v373
    %v378 = vmul.f32 %v324, %v374
    %v379 = vmul.f32 %v327, %v375
    %v380 = vadd.f32 %v376, %v377
    %v381 = vrot.slane %v380, 4
    %v382 = vadd.f32 %v380, %v381
    %v383 = vrot.slane %v382, 2
    %v384 = vadd.f32 %v382, %v383
    %v385 = vrot.slane %v384, 1
    %v386 = vadd.f32 %v384, %v385
    %v387 = vadd.f32 %v378, %v379
    %v388 = vrot.slane %v387, 4
    %v389 = vadd.f32 %v387, %v388
    %v390 = vrot.slane %v389, 2
    %v391 = vadd.f32 %v389, %v390
    %v392 = vrot.slane %v391, 1
    %v393 = vadd.f32 %v391, %v392
    %v394 = vmax.f32 %v386, 1e-24
    %v395 = vmax.f32 %v393, 1e-24
    %v396 = vrsqrt.pop %v394
    %v397 = vmul.f32 %v396, %v394
    %v398 = vmul.f32 %v397, %v396
    %v399 = vmul.f32 0.5, %v398
    %v400 = vsub.f32 1.5, %v399
    %v401 = vmul.f32 %v396, %v400
    %vm402 = vweird.f32 %v394
    %vm403 = vweird.f32 %v396
    %vm404 = vmor %vm402, %vm403
    %v405 = vsel %vm404, %v396, %v401
    %v406 = vrsqrt.pop %v395
    %v407 = vmul.f32 %v406, %v395
    %v408 = vmul.f32 %v407, %v406
    %v409 = vmul.f32 0.5, %v408
    %v410 = vsub.f32 1.5, %v409
    %v411 = vmul.f32 %v406, %v410
    %vm412 = vweird.f32 %v395
    %vm413 = vweird.f32 %v406
    %vm414 = vmor %vm412, %vm413
    %v415 = vsel %vm414, %v406, %v411
    %v416 = vmul.f32 %v341, %v405
    %v417 = vmul.f32 %v351, %v405
    %v418 = vmul.f32 %v361, %v415
    %v419 = vmul.f32 %v371, %v415
    %v420 = vmul.f32 %v308, %v416
    %v421 = vmul.f32 %v309, %v417
    %v422 = vmul.f32 %v310, %v418
    %v423 = vmul.f32 %v311, %v419
    %v424 = vld [vmem:[%s5] sm:$0xf]
    %v425 = vld [vmem:[%s5 + $0x4] sm:$0xf]
    %v426 = vld [vmem:[%s5 + $0x8] sm:$0xf]
    %v427 = vld [vmem:[%s5 + $0xc] sm:$0xf]
    %v428 = vld [vmem:[%s5 + $0x10] sm:$0xf]
    %v429 = vld [vmem:[%s5 + $0x14] sm:$0xf]
    %v430 = vld [vmem:[%s5 + $0x18] sm:$0xf]
    %v431 = vld [vmem:[%s5 + $0x1c] sm:$0xf]
    %v432 = vld [vmem:[%s5 + $0x20] sm:$0xf]
    %v433 = vld [vmem:[%s5 + $0x24] sm:$0xf]
    %v434 = vld [vmem:[%s5 + $0x28] sm:$0xf]
    %v435 = vld [vmem:[%s5 + $0x2c] sm:$0xf]
    %v436 = vld [vmem:[%s5 + $0x30] sm:$0xf]
    %v437 = vld [vmem:[%s5 + $0x34] sm:$0xf]
    %v438 = vld [vmem:[%s5 + $0x38] sm:$0xf]
    %v439 = vld [vmem:[%s5 + $0x3c] sm:$0xf]
    %v440 = vld [vmem:[%s5 + $0x40] sm:$0xf]
    %v441 = vld [vmem:[%s5 + $0x44] sm:$0xf]
    %v442 = vld [vmem:[%s5 + $0x48] sm:$0xf]
    %v443 = vld [vmem:[%s5 + $0x4c] sm:$0xf]
    %v444 = vld [vmem:[%s5 + $0x50] sm:$0xf]
    %v445 = vld [vmem:[%s5 + $0x54] sm:$0xf]
    %v446 = vld [vmem:[%s5 + $0x58] sm:$0xf]
    %v447 = vld [vmem:[%s5 + $0x5c] sm:$0xf]
    %v448 = vld [vmem:[%s5 + $0x60] sm:$0xf]
    %v449 = vld [vmem:[%s5 + $0x64] sm:$0xf]
    %v450 = vld [vmem:[%s5 + $0x68] sm:$0xf]
    %v451 = vld [vmem:[%s5 + $0x6c] sm:$0xf]
    %v452 = vld [vmem:[%s5 + $0x70] sm:$0xf]
    %v453 = vld [vmem:[%s5 + $0x74] sm:$0xf]
    %v454 = vld [vmem:[%s5 + $0x78] sm:$0xf]
    %v455 = vld [vmem:[%s5 + $0x7c] sm:$0xf]
    %v456 = vld [vmem:[%s5 + $0x80] sm:$0xf]
    %v457 = vld [vmem:[%s5 + $0x84] sm:$0xf]
    %v458 = vld [vmem:[%s5 + $0x88] sm:$0xf]
    %v459 = vld [vmem:[%s5 + $0x8c] sm:$0xf]
    %v460 = vld [vmem:[%s5 + $0x90] sm:$0xf]
    %v461 = vld [vmem:[%s5 + $0x94] sm:$0xf]
    %v462 = vld [vmem:[%s5 + $0x98] sm:$0xf]
    %v463 = vld [vmem:[%s5 + $0x9c] sm:$0xf]
    %v464 = vld [vmem:[%s5 + $0xa0] sm:$0xf]
    %v465 = vld [vmem:[%s5 + $0xa4] sm:$0xf]
    %v466 = vld [vmem:[%s5 + $0xa8] sm:$0xf]
    %v467 = vld [vmem:[%s5 + $0xac] sm:$0xf]
    %v468 = vld [vmem:[%s5 + $0xb0] sm:$0xf]
    %v469 = vld [vmem:[%s5 + $0xb4] sm:$0xf]
    %v470 = vld [vmem:[%s5 + $0xb8] sm:$0xf]
    %v471 = vld [vmem:[%s5 + $0xbc] sm:$0xf]
    %v472 = vld [vmem:[%s5 + $0xc0] sm:$0xf]
    %v473 = vld [vmem:[%s5 + $0xc4] sm:$0xf]
    %v474 = vld [vmem:[%s5 + $0xc8] sm:$0xf]
    %v475 = vld [vmem:[%s5 + $0xcc] sm:$0xf]
    %v476 = vld [vmem:[%s5 + $0xd0] sm:$0xf]
    %v477 = vld [vmem:[%s5 + $0xd4] sm:$0xf]
    %v478 = vld [vmem:[%s5 + $0xd8] sm:$0xf]
    %v479 = vld [vmem:[%s5 + $0xdc] sm:$0xf]
    %v480 = vld [vmem:[%s5 + $0xe0] sm:$0xf]
    %v481 = vld [vmem:[%s5 + $0xe4] sm:$0xf]
    %v482 = vld [vmem:[%s5 + $0xe8] sm:$0xf]
    %v483 = vld [vmem:[%s5 + $0xec] sm:$0xf]
    %v484 = vld [vmem:[%s5 + $0xf0] sm:$0xf]
    %v485 = vld [vmem:[%s5 + $0xf4] sm:$0xf]
    %v486 = vld [vmem:[%s5 + $0xf8] sm:$0xf]
    %v487 = vld [vmem:[%s5 + $0xfc] sm:$0xf]
    %v488 = vunpack.c.l.bf16 %v424
    %v489 = vunpack.c.l.bf16 %v425
    %v490 = vunpack.c.l.bf16 %v426
    %v491 = vunpack.c.l.bf16 %v427
    %v492 = vunpack.c.l.bf16 %v428
    %v493 = vunpack.c.l.bf16 %v429
    %v494 = vunpack.c.l.bf16 %v430
    %v495 = vunpack.c.l.bf16 %v431
    %v496 = vunpack.c.l.bf16 %v432
    %v497 = vunpack.c.l.bf16 %v433
    %v498 = vunpack.c.l.bf16 %v434
    %v499 = vunpack.c.l.bf16 %v435
    %v500 = vunpack.c.l.bf16 %v436
    %v501 = vunpack.c.l.bf16 %v437
    %v502 = vunpack.c.l.bf16 %v438
    %v503 = vunpack.c.l.bf16 %v439
    %v504 = vunpack.c.l.bf16 %v440
    %v505 = vunpack.c.l.bf16 %v441
    %v506 = vunpack.c.l.bf16 %v442
    %v507 = vunpack.c.l.bf16 %v443
    %v508 = vunpack.c.l.bf16 %v444
    %v509 = vunpack.c.l.bf16 %v445
    %v510 = vunpack.c.l.bf16 %v446
    %v511 = vunpack.c.l.bf16 %v447
    %v512 = vunpack.c.l.bf16 %v448
    %v513 = vunpack.c.l.bf16 %v449
    %v514 = vunpack.c.l.bf16 %v450
    %v515 = vunpack.c.l.bf16 %v451
    %v516 = vunpack.c.l.bf16 %v452
    %v517 = vunpack.c.l.bf16 %v453
    %v518 = vunpack.c.l.bf16 %v454
    %v519 = vunpack.c.l.bf16 %v455
    %v520 = vunpack.c.l.bf16 %v456
    %v521 = vunpack.c.l.bf16 %v457
    %v522 = vunpack.c.l.bf16 %v458
    %v523 = vunpack.c.l.bf16 %v459
    %v524 = vunpack.c.l.bf16 %v460
    %v525 = vunpack.c.l.bf16 %v461
    %v526 = vunpack.c.l.bf16 %v462
    %v527 = vunpack.c.l.bf16 %v463
    %v528 = vunpack.c.l.bf16 %v464
    %v529 = vunpack.c.l.bf16 %v465
    %v530 = vunpack.c.l.bf16 %v466
    %v531 = vunpack.c.l.bf16 %v467
    %v532 = vunpack.c.l.bf16 %v468
    %v533 = vunpack.c.l.bf16 %v469
    %v534 = vunpack.c.l.bf16 %v470
    %v535 = vunpack.c.l.bf16 %v471
    %v536 = vunpack.c.l.bf16 %v472
    %v537 = vunpack.c.l.bf16 %v473
    %v538 = vunpack.c.l.bf16 %v474
    %v539 = vunpack.c.l.bf16 %v475
    %v540 = vunpack.c.l.bf16 %v476
    %v541 = vunpack.c.l.bf16 %v477
    %v542 = vunpack.c.l.bf16 %v478
    %v543 = vunpack.c.l.bf16 %v479
    %v544 = vunpack.c.l.bf16 %v480
    %v545 = vunpack.c.l.bf16 %v481
    %v546 = vunpack.c.l.bf16 %v482
    %v547 = vunpack.c.l.bf16 %v483
    %v548 = vunpack.c.l.bf16 %v484
    %v549 = vunpack.c.l.bf16 %v485
    %v550 = vunpack.c.l.bf16 %v486
    %v551 = vunpack.c.l.bf16 %v487
    %v552 = vrot.slane %v420, 4
    %vm553 = vcmask 1047556
    %v554 = vsel %vm553, 0.0, %v552
    %v556 = vunpack.c.l.s4 1983009808
    %v557 = vunpack.c.0.s8 %v556
    %v558 = vperm.slane %v420, %v557
    %v560 = vunpack.c.l.s4 1983009808
    %v561 = vunpack.c.0.s8 %v560
    %v562 = vperm.slane %v554, %v561
    %v563 = vrot.slane %v422, 4
    %v564 = vsel %vm553, 0.0, %v563
    %v566 = vunpack.c.l.s4 1983009808
    %v567 = vunpack.c.0.s8 %v566
    %v568 = vperm.slane %v422, %v567
    %v570 = vunpack.c.l.s4 1983009808
    %v571 = vunpack.c.0.s8 %v570
    %v572 = vperm.slane %v564, %v571
    %v573 = vrot.slane %v568, 4
    %v574 = vsel %vm553, %v573, %v558
    %v575 = vrot.slane %v558, 4
    %v576 = vsel %vm553, %v568, %v575
    %v578 = vunpack.c.l.s4 1934713408
    %v579 = vunpack.c.0.s8 %v578
    %v580 = vperm.slane %v574, %v579
    %v582 = vunpack.c.l.s4 1934713408
    %v583 = vunpack.c.0.s8 %v582
    %v584 = vperm.slane %v576, %v583
    %v585 = vrot.slane %v572, 4
    %v586 = vsel %vm553, %v585, %v562
    %v587 = vrot.slane %v562, 4
    %v588 = vsel %vm553, %v572, %v587
    %v590 = vunpack.c.l.s4 1934713408
    %v591 = vunpack.c.0.s8 %v590
    %v592 = vperm.slane %v586, %v591
    %v594 = vunpack.c.l.s4 1934713408
    %v595 = vunpack.c.0.s8 %v594
    %v596 = vperm.slane %v588, %v595
    %v597 = vrot.slane %v580, 4
    %v598 = vsel %vm553, 0.0, %v597
    %v599 = vrot.slane %v584, 4
    %v600 = vsel %vm553, 0.0, %v599
    %v601 = vrot.slane %v592, 4
    %v602 = vsel %vm553, 0.0, %v601
    %v603 = vrot.slane %v596, 4
    %v604 = vsel %vm553, 0.0, %v603
    %v605 = vrot.slane %v421, 4
    %v606 = vsel %vm553, 0.0, %v605
    %v608 = vunpack.c.l.s4 1983009808
    %v609 = vunpack.c.0.s8 %v608
    %v610 = vperm.slane %v421, %v609
    %v612 = vunpack.c.l.s4 1983009808
    %v613 = vunpack.c.0.s8 %v612
    %v614 = vperm.slane %v606, %v613
    %v615 = vrot.slane %v423, 4
    %v616 = vsel %vm553, 0.0, %v615
    %v618 = vunpack.c.l.s4 1983009808
    %v619 = vunpack.c.0.s8 %v618
    %v620 = vperm.slane %v423, %v619
    %v622 = vunpack.c.l.s4 1983009808
    %v623 = vunpack.c.0.s8 %v622
    %v624 = vperm.slane %v616, %v623
    %v625 = vrot.slane %v620, 4
    %v626 = vsel %vm553, %v625, %v610
    %v627 = vrot.slane %v610, 4
    %v628 = vsel %vm553, %v620, %v627
    %v630 = vunpack.c.l.s4 1934713408
    %v631 = vunpack.c.0.s8 %v630
    %v632 = vperm.slane %v626, %v631
    %v634 = vunpack.c.l.s4 1934713408
    %v635 = vunpack.c.0.s8 %v634
    %v636 = vperm.slane %v628, %v635
    %v637 = vrot.slane %v624, 4
    %v638 = vsel %vm553, %v637, %v614
    %v639 = vrot.slane %v614, 4
    %v640 = vsel %vm553, %v624, %v639
    %v642 = vunpack.c.l.s4 1934713408
    %v643 = vunpack.c.0.s8 %v642
    %v644 = vperm.slane %v638, %v643
    %v646 = vunpack.c.l.s4 1934713408
    %v647 = vunpack.c.0.s8 %v646
    %v648 = vperm.slane %v640, %v647
    %v649 = vrot.slane %v632, 4
    %v650 = vsel %vm553, 0.0, %v649
    %v651 = vrot.slane %v636, 4
    %v652 = vsel %vm553, 0.0, %v651
    %v653 = vrot.slane %v644, 4
    %v654 = vsel %vm553, 0.0, %v653
    %v655 = vrot.slane %v648, 4
    %v656 = vsel %vm553, 0.0, %v655
    %v658 = vsel %vm37, %v580, 0
    %660 = vmatpush.msra.mxu0 0.0
    %661 = vmatpush.msra.mxu0 0.0
    %662 = vmatpush.msra.mxu0 0.0
    %663 = vmatpush.msra.mxu0 0.0
    %664 = vmatpush.msra.mxu0 0.0
    %665 = vmatpush.msra.mxu0 0.0
    %666 = vmatpush.msra.mxu0 0.0
    %667 = vmatpush.msra.mxu0 0.0
    %668 = vmatpush.msra.mxu0 0.0
    %669 = vmatpush.msra.mxu0 0.0
    %670 = vmatpush.msra.mxu0 0.0
    %671 = vmatpush.msra.mxu0 0.0
    %672 = vmatpush.msra.mxu0 %v491
    %673 = vmatpush.msra.mxu0 %v490
    %674 = vmatpush.msra.mxu0 %v489
    %675 = vmatpush.msra.mxu0 %v488
    %676 = vmatmul.f32.gmra.mxu0 %v658
    %v677 = vpop.f32.mrf.mxu0
    %v678 = vadd.f32 0.0, %v677
    %679 = vdwg.mxu0
    %v681 = vsel %vm37, %v598, 0
    %683 = vmatpush.msra.mxu0 0.0
    %684 = vmatpush.msra.mxu0 0.0
    %685 = vmatpush.msra.mxu0 0.0
    %686 = vmatpush.msra.mxu0 0.0
    %687 = vmatpush.msra.mxu0 0.0
    %688 = vmatpush.msra.mxu0 0.0
    %689 = vmatpush.msra.mxu0 0.0
    %690 = vmatpush.msra.mxu0 0.0
    %691 = vmatpush.msra.mxu0 0.0
    %692 = vmatpush.msra.mxu0 0.0
    %693 = vmatpush.msra.mxu0 0.0
    %694 = vmatpush.msra.mxu0 0.0
    %695 = vmatpush.msra.mxu0 %v495
    %696 = vmatpush.msra.mxu0 %v494
    %697 = vmatpush.msra.mxu0 %v493
    %698 = vmatpush.msra.mxu0 %v492
    %699 = vmatmul.f32.gmra.mxu0 %v681
    %v700 = vpop.f32.mrf.mxu0
    %v701 = vadd.f32 0.0, %v700
    %702 = vdwg.mxu0
    %v704 = vsel %vm37, %v584, 0
    %706 = vmatpush.msra.mxu0 0.0
    %707 = vmatpush.msra.mxu0 0.0
    %708 = vmatpush.msra.mxu0 0.0
    %709 = vmatpush.msra.mxu0 0.0
    %710 = vmatpush.msra.mxu0 0.0
    %711 = vmatpush.msra.mxu0 0.0
    %712 = vmatpush.msra.mxu0 0.0
    %713 = vmatpush.msra.mxu0 0.0
    %714 = vmatpush.msra.mxu0 0.0
    %715 = vmatpush.msra.mxu0 0.0
    %716 = vmatpush.msra.mxu0 0.0
    %717 = vmatpush.msra.mxu0 0.0
    %718 = vmatpush.msra.mxu0 %v499
    %719 = vmatpush.msra.mxu0 %v498
    %720 = vmatpush.msra.mxu0 %v497
    %721 = vmatpush.msra.mxu0 %v496
    %722 = vmatmul.f32.gmra.mxu0 %v704
    %v723 = vpop.f32.mrf.mxu0
    %v724 = vadd.f32 0.0, %v723
    %725 = vdwg.mxu0
    %v727 = vsel %vm37, %v600, 0
    %729 = vmatpush.msra.mxu0 0.0
    %730 = vmatpush.msra.mxu0 0.0
    %731 = vmatpush.msra.mxu0 0.0
    %732 = vmatpush.msra.mxu0 0.0
    %733 = vmatpush.msra.mxu0 0.0
    %734 = vmatpush.msra.mxu0 0.0
    %735 = vmatpush.msra.mxu0 0.0
    %736 = vmatpush.msra.mxu0 0.0
    %737 = vmatpush.msra.mxu0 0.0
    %738 = vmatpush.msra.mxu0 0.0
    %739 = vmatpush.msra.mxu0 0.0
    %740 = vmatpush.msra.mxu0 0.0
    %741 = vmatpush.msra.mxu0 %v503
    %742 = vmatpush.msra.mxu0 %v502
    %743 = vmatpush.msra.mxu0 %v501
    %744 = vmatpush.msra.mxu0 %v500
    %745 = vmatmul.f32.gmra.mxu0 %v727
    %v746 = vpop.f32.mrf.mxu0
    %v747 = vadd.f32 0.0, %v746
    %748 = vdwg.mxu0
    %v750 = vsel %vm37, %v592, 0
    %752 = vmatpush.msra.mxu0 0.0
    %753 = vmatpush.msra.mxu0 0.0
    %754 = vmatpush.msra.mxu0 0.0
    %755 = vmatpush.msra.mxu0 0.0
    %756 = vmatpush.msra.mxu0 0.0
    %757 = vmatpush.msra.mxu0 0.0
    %758 = vmatpush.msra.mxu0 0.0
    %759 = vmatpush.msra.mxu0 0.0
    %760 = vmatpush.msra.mxu0 0.0
    %761 = vmatpush.msra.mxu0 0.0
    %762 = vmatpush.msra.mxu0 0.0
    %763 = vmatpush.msra.mxu0 0.0
    %764 = vmatpush.msra.mxu0 %v507
    %765 = vmatpush.msra.mxu0 %v506
    %766 = vmatpush.msra.mxu0 %v505
    %767 = vmatpush.msra.mxu0 %v504
    %768 = vmatmul.f32.gmra.mxu0 %v750
    %v769 = vpop.f32.mrf.mxu0
    %v770 = vadd.f32 0.0, %v769
    %771 = vdwg.mxu0
    %v773 = vsel %vm37, %v602, 0
    %775 = vmatpush.msra.mxu0 0.0
    %776 = vmatpush.msra.mxu0 0.0
    %777 = vmatpush.msra.mxu0 0.0
    %778 = vmatpush.msra.mxu0 0.0
    %779 = vmatpush.msra.mxu0 0.0
    %780 = vmatpush.msra.mxu0 0.0
    %781 = vmatpush.msra.mxu0 0.0
    %782 = vmatpush.msra.mxu0 0.0
    %783 = vmatpush.msra.mxu0 0.0
    %784 = vmatpush.msra.mxu0 0.0
    %785 = vmatpush.msra.mxu0 0.0
    %786 = vmatpush.msra.mxu0 0.0
    %787 = vmatpush.msra.mxu0 %v511
    %788 = vmatpush.msra.mxu0 %v510
    %789 = vmatpush.msra.mxu0 %v509
    %790 = vmatpush.msra.mxu0 %v508
    %791 = vmatmul.f32.gmra.mxu0 %v773
    %v792 = vpop.f32.mrf.mxu0
    %v793 = vadd.f32 0.0, %v792
    %794 = vdwg.mxu0
    %v796 = vsel %vm37, %v596, 0
    %798 = vmatpush.msra.mxu0 0.0
    %799 = vmatpush.msra.mxu0 0.0
    %800 = vmatpush.msra.mxu0 0.0
    %801 = vmatpush.msra.mxu0 0.0
    %802 = vmatpush.msra.mxu0 0.0
    %803 = vmatpush.msra.mxu0 0.0
    %804 = vmatpush.msra.mxu0 0.0
    %805 = vmatpush.msra.mxu0 0.0
    %806 = vmatpush.msra.mxu0 0.0
    %807 = vmatpush.msra.mxu0 0.0
    %808 = vmatpush.msra.mxu0 0.0
    %809 = vmatpush.msra.mxu0 0.0
    %810 = vmatpush.msra.mxu0 %v515
    %811 = vmatpush.msra.mxu0 %v514
    %812 = vmatpush.msra.mxu0 %v513
    %813 = vmatpush.msra.mxu0 %v512
    %814 = vmatmul.f32.gmra.mxu0 %v796
    %v815 = vpop.f32.mrf.mxu0
    %v816 = vadd.f32 0.0, %v815
    %817 = vdwg.mxu0
    %v819 = vsel %vm37, %v604, 0
    %821 = vmatpush.msra.mxu0 0.0
    %822 = vmatpush.msra.mxu0 0.0
    %823 = vmatpush.msra.mxu0 0.0
    %824 = vmatpush.msra.mxu0 0.0
    %825 = vmatpush.msra.mxu0 0.0
    %826 = vmatpush.msra.mxu0 0.0
    %827 = vmatpush.msra.mxu0 0.0
    %828 = vmatpush.msra.mxu0 0.0
    %829 = vmatpush.msra.mxu0 0.0
    %830 = vmatpush.msra.mxu0 0.0
    %831 = vmatpush.msra.mxu0 0.0
    %832 = vmatpush.msra.mxu0 0.0
    %833 = vmatpush.msra.mxu0 %v519
    %834 = vmatpush.msra.mxu0 %v518
    %835 = vmatpush.msra.mxu0 %v517
    %836 = vmatpush.msra.mxu0 %v516
    %837 = vmatmul.f32.gmra.mxu0 %v819
    %v838 = vpop.f32.mrf.mxu0
    %v839 = vadd.f32 0.0, %v838
    %840 = vdwg.mxu0
    %v842 = vsel %vm37, %v632, 0
    %844 = vmatpush.msra.mxu0 0.0
    %845 = vmatpush.msra.mxu0 0.0
    %846 = vmatpush.msra.mxu0 0.0
    %847 = vmatpush.msra.mxu0 0.0
    %848 = vmatpush.msra.mxu0 0.0
    %849 = vmatpush.msra.mxu0 0.0
    %850 = vmatpush.msra.mxu0 0.0
    %851 = vmatpush.msra.mxu0 0.0
    %852 = vmatpush.msra.mxu0 0.0
    %853 = vmatpush.msra.mxu0 0.0
    %854 = vmatpush.msra.mxu0 0.0
    %855 = vmatpush.msra.mxu0 0.0
    %856 = vmatpush.msra.mxu0 %v523
    %857 = vmatpush.msra.mxu0 %v522
    %858 = vmatpush.msra.mxu0 %v521
    %859 = vmatpush.msra.mxu0 %v520
    %860 = vmatmul.f32.gmra.mxu0 %v842
    %v861 = vpop.f32.mrf.mxu0
    %v862 = vadd.f32 0.0, %v861
    %863 = vdwg.mxu0
    %v865 = vsel %vm37, %v650, 0
    %867 = vmatpush.msra.mxu0 0.0
    %868 = vmatpush.msra.mxu0 0.0
    %869 = vmatpush.msra.mxu0 0.0
    %870 = vmatpush.msra.mxu0 0.0
    %871 = vmatpush.msra.mxu0 0.0
    %872 = vmatpush.msra.mxu0 0.0
    %873 = vmatpush.msra.mxu0 0.0
    %874 = vmatpush.msra.mxu0 0.0
    %875 = vmatpush.msra.mxu0 0.0
    %876 = vmatpush.msra.mxu0 0.0
    %877 = vmatpush.msra.mxu0 0.0
    %878 = vmatpush.msra.mxu0 0.0
    %879 = vmatpush.msra.mxu0 %v527
    %880 = vmatpush.msra.mxu0 %v526
    %881 = vmatpush.msra.mxu0 %v525
    %882 = vmatpush.msra.mxu0 %v524
    %883 = vmatmul.f32.gmra.mxu0 %v865
    %v884 = vpop.f32.mrf.mxu0
    %v885 = vadd.f32 0.0, %v884
    %886 = vdwg.mxu0
    %v888 = vsel %vm37, %v636, 0
    %890 = vmatpush.msra.mxu0 0.0
    %891 = vmatpush.msra.mxu0 0.0
    %892 = vmatpush.msra.mxu0 0.0
    %893 = vmatpush.msra.mxu0 0.0
    %894 = vmatpush.msra.mxu0 0.0
    %895 = vmatpush.msra.mxu0 0.0
    %896 = vmatpush.msra.mxu0 0.0
    %897 = vmatpush.msra.mxu0 0.0
    %898 = vmatpush.msra.mxu0 0.0
    %899 = vmatpush.msra.mxu0 0.0
    %900 = vmatpush.msra.mxu0 0.0
    %901 = vmatpush.msra.mxu0 0.0
    %902 = vmatpush.msra.mxu0 %v531
    %903 = vmatpush.msra.mxu0 %v530
    %904 = vmatpush.msra.mxu0 %v529
    %905 = vmatpush.msra.mxu0 %v528
    %906 = vmatmul.f32.gmra.mxu0 %v888
    %v907 = vpop.f32.mrf.mxu0
    %v908 = vadd.f32 0.0, %v907
    %909 = vdwg.mxu0
    %v911 = vsel %vm37, %v652, 0
    %913 = vmatpush.msra.mxu0 0.0
    %914 = vmatpush.msra.mxu0 0.0
    %915 = vmatpush.msra.mxu0 0.0
    %916 = vmatpush.msra.mxu0 0.0
    %917 = vmatpush.msra.mxu0 0.0
    %918 = vmatpush.msra.mxu0 0.0
    %919 = vmatpush.msra.mxu0 0.0
    %920 = vmatpush.msra.mxu0 0.0
    %921 = vmatpush.msra.mxu0 0.0
    %922 = vmatpush.msra.mxu0 0.0
    %923 = vmatpush.msra.mxu0 0.0
    %924 = vmatpush.msra.mxu0 0.0
    %925 = vmatpush.msra.mxu0 %v535
    %926 = vmatpush.msra.mxu0 %v534
    %927 = vmatpush.msra.mxu0 %v533
    %928 = vmatpush.msra.mxu0 %v532
    %929 = vmatmul.f32.gmra.mxu0 %v911
    %v930 = vpop.f32.mrf.mxu0
    %v931 = vadd.f32 0.0, %v930
    %932 = vdwg.mxu0
    %v934 = vsel %vm37, %v644, 0
    %936 = vmatpush.msra.mxu0 0.0
    %937 = vmatpush.msra.mxu0 0.0
    %938 = vmatpush.msra.mxu0 0.0
    %939 = vmatpush.msra.mxu0 0.0
    %940 = vmatpush.msra.mxu0 0.0
    %941 = vmatpush.msra.mxu0 0.0
    %942 = vmatpush.msra.mxu0 0.0
    %943 = vmatpush.msra.mxu0 0.0
    %944 = vmatpush.msra.mxu0 0.0
    %945 = vmatpush.msra.mxu0 0.0
    %946 = vmatpush.msra.mxu0 0.0
    %947 = vmatpush.msra.mxu0 0.0
    %948 = vmatpush.msra.mxu0 %v539
    %949 = vmatpush.msra.mxu0 %v538
    %950 = vmatpush.msra.mxu0 %v537
    %951 = vmatpush.msra.mxu0 %v536
    %952 = vmatmul.f32.gmra.mxu0 %v934
    %v953 = vpop.f32.mrf.mxu0
    %v954 = vadd.f32 0.0, %v953
    %955 = vdwg.mxu0
    %v957 = vsel %vm37, %v654, 0
    %959 = vmatpush.msra.mxu0 0.0
    %960 = vmatpush.msra.mxu0 0.0
    %961 = vmatpush.msra.mxu0 0.0
    %962 = vmatpush.msra.mxu0 0.0
    %963 = vmatpush.msra.mxu0 0.0
    %964 = vmatpush.msra.mxu0 0.0
    %965 = vmatpush.msra.mxu0 0.0
    %966 = vmatpush.msra.mxu0 0.0
    %967 = vmatpush.msra.mxu0 0.0
    %968 = vmatpush.msra.mxu0 0.0
    %969 = vmatpush.msra.mxu0 0.0
    %970 = vmatpush.msra.mxu0 0.0
    %971 = vmatpush.msra.mxu0 %v543
    %972 = vmatpush.msra.mxu0 %v542
    %973 = vmatpush.msra.mxu0 %v541
    %974 = vmatpush.msra.mxu0 %v540
    %975 = vmatmul.f32.gmra.mxu0 %v957
    %v976 = vpop.f32.mrf.mxu0
    %v977 = vadd.f32 0.0, %v976
    %978 = vdwg.mxu0
    %v980 = vsel %vm37, %v648, 0
    %982 = vmatpush.msra.mxu0 0.0
    %983 = vmatpush.msra.mxu0 0.0
    %984 = vmatpush.msra.mxu0 0.0
    %985 = vmatpush.msra.mxu0 0.0
    %986 = vmatpush.msra.mxu0 0.0
    %987 = vmatpush.msra.mxu0 0.0
    %988 = vmatpush.msra.mxu0 0.0
    %989 = vmatpush.msra.mxu0 0.0
    %990 = vmatpush.msra.mxu0 0.0
    %991 = vmatpush.msra.mxu0 0.0
    %992 = vmatpush.msra.mxu0 0.0
    %993 = vmatpush.msra.mxu0 0.0
    %994 = vmatpush.msra.mxu0 %v547
    %995 = vmatpush.msra.mxu0 %v546
    %996 = vmatpush.msra.mxu0 %v545
    %997 = vmatpush.msra.mxu0 %v544
    %998 = vmatmul.f32.gmra.mxu0 %v980
    %v999 = vpop.f32.mrf.mxu0
    %v1000 = vadd.f32 0.0, %v999
    %1001 = vdwg.mxu0
    %v1003 = vsel %vm37, %v656, 0
    %1005 = vmatpush.msra.mxu0 0.0
    %1006 = vmatpush.msra.mxu0 0.0
    %1007 = vmatpush.msra.mxu0 0.0
    %1008 = vmatpush.msra.mxu0 0.0
    %1009 = vmatpush.msra.mxu0 0.0
    %1010 = vmatpush.msra.mxu0 0.0
    %1011 = vmatpush.msra.mxu0 0.0
    %1012 = vmatpush.msra.mxu0 0.0
    %1013 = vmatpush.msra.mxu0 0.0
    %1014 = vmatpush.msra.mxu0 0.0
    %1015 = vmatpush.msra.mxu0 0.0
    %1016 = vmatpush.msra.mxu0 0.0
    %1017 = vmatpush.msra.mxu0 %v551
    %1018 = vmatpush.msra.mxu0 %v550
    %1019 = vmatpush.msra.mxu0 %v549
    %1020 = vmatpush.msra.mxu0 %v548
    %1021 = vmatmul.f32.gmra.mxu0 %v1003
    %v1022 = vpop.f32.mrf.mxu0
    %v1023 = vadd.f32 0.0, %v1022
    %1024 = vdwg.mxu0
    %vm1025 = vcmask 254976
    %v1026 = vsel %vm1025, %v678, 0.0
    %v1027 = vsel %vm1025, %v701, 0.0
    %v1028 = vadd.f32 %v1026, %v1027
    %v1029 = vsel %vm1025, %v724, 0.0
    %v1030 = vadd.f32 %v1028, %v1029
    %v1031 = vsel %vm1025, %v747, 0.0
    %v1032 = vadd.f32 %v1030, %v1031
    %v1033 = vsel %vm1025, %v770, 0.0
    %v1034 = vadd.f32 %v1032, %v1033
    %v1035 = vsel %vm1025, %v793, 0.0
    %v1036 = vadd.f32 %v1034, %v1035
    %v1037 = vsel %vm1025, %v816, 0.0
    %v1038 = vadd.f32 %v1036, %v1037
    %v1039 = vsel %vm1025, %v839, 0.0
    %v1040 = vadd.f32 %v1038, %v1039
    %v1041 = vsel %vm1025, %v862, 0.0
    %v1042 = vadd.f32 %v1040, %v1041
    %v1043 = vsel %vm1025, %v885, 0.0
    %v1044 = vadd.f32 %v1042, %v1043
    %v1045 = vsel %vm1025, %v908, 0.0
    %v1046 = vadd.f32 %v1044, %v1045
    %v1047 = vsel %vm1025, %v931, 0.0
    %v1048 = vadd.f32 %v1046, %v1047
    %v1049 = vsel %vm1025, %v954, 0.0
    %v1050 = vadd.f32 %v1048, %v1049
    %v1051 = vsel %vm1025, %v977, 0.0
    %v1052 = vadd.f32 %v1050, %v1051
    %v1053 = vsel %vm1025, %v1000, 0.0
    %v1054 = vadd.f32 %v1052, %v1053
    %v1055 = vsel %vm1025, %v1023, 0.0
    %v1056 = vadd.f32 %v1054, %v1055
    %v1057 = vld [vmem:[%s6] sm:$0x1]
    %v1059 = vperm.slane %v1057, 0
    %v1061 = vadd.f32 %v1056, %v1059
    %1062 = vst.msk [vmem:[#allocation2] sm:$0x3] %vm1025, %v1061
    // Predicated region
    $region30: #{netvlad_forward.1} parent=1 // pred_check
      _
    $region31: #{netvlad_forward.1} parent=1 // pred_check_branch
      %1064 = sbr.rel (0) target = $region33
    $region32: #{netvlad_forward.1} parent=1 // pred_region
      %1066 = vsyncadd [#allocation3], 0
      %s1068 = sshll.u32 [#allocation2], 4
      %s1069 = int_to_ptr.vmem [resolvable:$true] %s1068
      %s1070 = sshll.u32 %s7, 4
      %s1071 = int_to_ptr.hbm [resolvable:$true] %s1070
      %1073 = dma.vmem_to_hbm [thread:$0]  %s1069, 32, %s1071, [#allocation3]
    $region33: #{netvlad_forward.1} parent=1 // pred_fallthru
      _
    // Predicated region
    $region34: #{netvlad_forward.1} parent=1 // pred_check
      _
    $region35: #{netvlad_forward.1} parent=1 // pred_check_branch
      %1075 = sbr.rel (0) target = $region37
    $region36: #{netvlad_forward.1} parent=1 // pred_region
      %1077 = dma.done [#allocation3], 32
    $region37: #{netvlad_forward.1} parent=1 // pred_fallthru
      _
    %1078 = vsyncpa [#allocation3], 1

</llo_original>
